<compile_context>
chip_gen: v7x
topology: tpu7x:2x2x1
jax: 0.10.0
libtpu: 0.0.40
codegen_flags: <defaults>
</compile_context>

<pallas_src>
import functools

import jax
import jax.numpy as jnp
from jax.experimental import pallas as pl
from jax.experimental.pallas import tpu as pltpu

LANES = 128
SUBLANES = 8


def _focal_elementwise(x, t, *, gamma, assume_binary_targets):
    """focal = (1 - pt)**gamma * bce  (alpha is applied in the wrapper)."""
    # Stable binary_cross_entropy_with_logits (reduction='none'):
    #   bce = max(x, 0) - x*t + log1p(exp(-|x|))
    e = jnp.exp(-jnp.abs(x))
    bce = jnp.maximum(x, 0.0) - x * t + jnp.log1p(e)
    if assume_binary_targets:
        # For t in {0,1}: exp(x*t - max(x,0)) is a select between e and 1, so
        # pt needs no third transcendental (2 exp/log + 1 reciprocal total).
        num = jnp.where(t > 0.5,
                        jnp.where(x < 0.0, e, 1.0),
                        jnp.where(x > 0.0, e, 1.0))
        pt = num / (1.0 + e)
    else:
        pt = jnp.exp(-bce)
    # Rounding can push pt a hair above 1; keep the pow path NaN-free.
    w = jnp.maximum(1.0 - pt, 0.0)

    g = float(gamma)
    if g == 2.0:                      # module default: a single VPU square
        mod = w * w
    elif g == 1.0:
        mod = w
    elif g == 0.0:
        mod = jnp.ones_like(w)
    elif g.is_integer() and 0.0 < g <= 8.0:
        mod = w
        for _ in range(int(g) - 1):
            mod = mod * w
    else:                             # non-integer gamma: real pow on the EUP
        mod = w ** jnp.float32(g)
    return mod * bce


def _focal_kernel(x_ref, t_ref, out_ref, *, gamma, assume_binary_targets,
                  tm, n_steps, nb, full_rows, rem_lanes, mask_last, skip_dups):
    """One grid step: focal on a (tm, 128) tile folded into an (8, 128) acc."""
    c = pl.program_id(0)
    k = pl.program_id(1)

    @pl.when(k == 0)
    def _():
        out_ref[...] = jnp.zeros_like(out_ref)

    x = x_ref[...].astype(jnp.float32)
    t = t_ref[...].astype(jnp.float32)
    focal = _focal_elementwise(x, t, gamma=gamma,
                               assume_binary_targets=assume_binary_targets)

    def fold(v):
        # (tm,128) -> (8,128) partial sums: pure VPU adds, no cross-lane work.
        p = jnp.sum(v.reshape(tm // SUBLANES, SUBLANES, LANES), axis=0)
        return p.reshape(1, SUBLANES, LANES)

    if not mask_last and not skip_dups:
        # Hot path: every element of every block is valid -> no masking work.
        out_ref[...] += fold(focal)
    else:
        b = c * n_steps + k            # global block index (unclamped)
        last = nb - 1

        @pl.when(b < last)
        def _():
            out_ref[...] += fold(focal)

        @pl.when(b == last)
        def _():
            if mask_last:
                # Only the final block can contain padded lanes or stale rows
                # from a partial boundary DMA. Row/lane comparison (not a flat
                # int32 index) so nothing overflows until ~2^31 rows.
                r = last * tm + jax.lax.broadcasted_iota(
                    jnp.int32, (tm, LANES), 0)
                valid = r < full_rows
                if rem_lanes:
                    lane = jax.lax.broadcasted_iota(jnp.int32, (tm, LANES), 1)
                    valid = valid | ((r == full_rows) & (lane < rem_lanes))
                out_ref[...] += fold(jnp.where(valid, focal, 0.0))
            else:
                out_ref[...] += fold(focal)
        # b > last only happens for the trailing duplicate steps of an uneven
        # core split (index_map clamps them in-bounds); they accumulate nothing.


def _default_core_split():
    """2 on parts with >1 TensorCore per device (v4/v5p megacore, v7x), else 1."""
    try:
        kind = jax.devices()[0].device_kind.lower()
    except Exception:
        return 2
    single_tc = ("v2", "v3", "v5 lite", "v5e", "v5lite", "v6 lite", "v6e", "v6lite")
    if any(tag in kind for tag in single_tc):
        return 1
    return 2      # unknown / v4 / v5p / v7x: a 2-way split is harmless or a win


def focal_loss_mean(inputs, targets, *, alpha=1.0, gamma=2.0, tm=2048,
                    core_split=None, assume_binary_targets=False):
    """Focal loss with reduction='mean' (matches FocalLoss() defaults).

    Any shape/size; float inputs (f32/bf16/f16) stream through unconverted,
    integer/bool inputs are upcast to f32 in the wrapper. Set
    assume_binary_targets=True only if targets are exactly {0, 1}.
    """
    # TODO(synk): reduction='none' (elementwise output) variant not implemented;
    # only the module-default 'mean' reduction is provided.
    assert inputs.shape == targets.shape
    assert tm >= SUBLANES and tm % SUBLANES == 0
    total_n = int(inputs.size)
    assert total_n > 0

    def as_kernel_dtype(a):
        return a if jnp.issubdtype(a.dtype, jnp.floating) else a.astype(jnp.float32)

    x_flat = as_kernel_dtype(inputs).reshape(-1)
    t_flat = as_kernel_dtype(targets).reshape(-1)

    rows_raw = pl.cdiv(total_n, LANES)
    copy_free = (total_n % LANES == 0) and (rows_raw % SUBLANES == 0
                                            or rows_raw > tm)
    if copy_free:
        rows = rows_raw                      # reshape below is a free bitcast
    else:
        # TODO(synk): jnp.pad materializes a copy of both inputs. Only hit when
        # the flat size isn't a multiple of 128 (or is a tiny non-8-row slab);
        # typical dense-prediction sizes take the copy-free path above.
        rows = ((rows_raw + SUBLANES - 1) // SUBLANES) * SUBLANES
        pad = rows * LANES - total_n
        x_flat = jnp.pad(x_flat, (0, pad))
        t_flat = jnp.pad(t_flat, (0, pad))

    x2d = x_flat.reshape(rows, LANES)
    t2d = t_flat.reshape(rows, LANES)

    tm_eff = tm if rows > tm else rows       # tm_eff is always a multiple of 8
    nb = pl.cdiv(rows, tm_eff)               # number of row blocks
    if core_split is None:
        core_split = _default_core_split()
    core_split_eff = max(1, min(int(core_split), nb))
    n_steps = pl.cdiv(nb, core_split_eff)

    full_rows = total_n // LANES
    rem_lanes = total_n % LANES
    mask_last = (nb * tm_eff * LANES != total_n)   # final block has invalid slots
    skip_dups = (core_split_eff * n_steps != nb)   # uneven split -> clamped steps

    kernel = functools.partial(
        _focal_kernel, gamma=float(gamma),
        assume_binary_targets=bool(assume_binary_targets),
        tm=tm_eff, n_steps=n_steps, nb=nb, full_rows=full_rows,
        rem_lanes=rem_lanes, mask_last=mask_last, skip_dups=skip_dups)

    def in_index(c, k):
        # Clamp so trailing duplicate steps of an uneven core split stay in
        # bounds; the kernel skips their accumulation.
        return (jnp.minimum(c * n_steps + k, nb - 1), 0)

    itemsize = x2d.dtype.itemsize + t2d.dtype.itemsize
    cost = pl.CostEstimate(
        flops=15 * total_n,
        transcendentals=(2 if assume_binary_targets else 3) * total_n,
        bytes_accessed=rows * LANES * itemsize
        + core_split_eff * SUBLANES * LANES * 4)

    partials = pl.pallas_call(
        kernel,
        out_shape=jax.ShapeDtypeStruct((core_split_eff, SUBLANES, LANES),
                                       jnp.float32),
        grid=(core_split_eff, n_steps),
        in_specs=[pl.BlockSpec((tm_eff, LANES), in_index),
                  pl.BlockSpec((tm_eff, LANES), in_index)],
        out_specs=pl.BlockSpec((1, SUBLANES, LANES), lambda c, k: (c, 0, 0)),
        compiler_params=pltpu.CompilerParams(
            # Leading axis: per-core halves (megacore / v7x); trailing axis is
            # the running-sum reduction, kept on one core.
            dimension_semantics=("parallel", "arbitrary")),
        cost_estimate=cost,
    )(x2d, t2d)

    # Single cross-lane reduce + alpha scale + mean, once, outside the kernel.
    # f32 accumulation is spread over 1024 (sublane, lane) slots; fine for
    # typical sizes (revisit the error budget for N >> 1e9).
    return jnp.float32(alpha) * jnp.sum(partials) / jnp.float32(total_n)


def focal_loss_ref(inputs, targets, *, alpha=1.0, gamma=2.0):
    """Plain-JAX reference mirroring the PyTorch forward."""
    x = inputs.astype(jnp.float32)
    t = targets.astype(jnp.float32)
    bce = jnp.maximum(x, 0.0) - x * t + jnp.log1p(jnp.exp(-jnp.abs(x)))
    pt = jnp.exp(-bce)
    focal = alpha * (1.0 - pt) ** gamma * bce
    return focal.mean()


if __name__ == "__main__":
    key = jax.random.PRNGKey(0)
    k1, k2, k3, k4 = jax.random.split(key, 4)

    # NCHW-shaped logits / binary targets, as a conv head would produce.
    x = jax.random.normal(k1, (2, 4, 16, 16), dtype=jnp.float32) * 2.0
    targets = (jax.random.uniform(k2, (2, 4, 16, 16)) > 0.5).astype(jnp.float32)

    loss = jax.block_until_ready(focal_loss_mean(x, targets, alpha=1.0, gamma=2.0))
    ref = focal_loss_ref(x, targets, alpha=1.0, gamma=2.0)
    assert jnp.allclose(loss, ref, rtol=1e-5, atol=1e-6), (loss, ref)

    # Binary-target fast path (one fewer transcendental per element).
    loss_b = jax.block_until_ready(
        focal_loss_mean(x, targets, assume_binary_targets=True))
    assert jnp.allclose(loss_b, ref, rtol=1e-5, atol=1e-6), (loss_b, ref)

    # Exercise the boundary-block / last-step-mask / uneven-core-split paths
    # with soft targets on a row count that divides neither 8 nor the tile.
    x2 = jax.random.normal(k3, (17, 128), dtype=jnp.float32)
    t2 = jax.random.uniform(k4, (17, 128), dtype=jnp.float32)
    loss2 = jax.block_until_ready(
        focal_loss_mean(x2, t2, alpha=0.25, gamma=3.0, tm=8, core_split=2))
    ref2 = focal_loss_ref(x2, t2, alpha=0.25, gamma=3.0)
    assert jnp.allclose(loss2, ref2, rtol=1e-5, atol=1e-6), (loss2, ref2)

    # Exercise the padded (size not a multiple of 128) path.
    x3 = jax.random.normal(k1, (3, 5, 17), dtype=jnp.float32)
    t3 = jax.random.uniform(k2, (3, 5, 17), dtype=jnp.float32)
    loss3 = jax.block_until_ready(focal_loss_mean(x3, t3))
    ref3 = focal_loss_ref(x3, t3)
    assert jnp.allclose(loss3, ref3, rtol=1e-5, atol=1e-6), (loss3, ref3)

    print("KERNEL_OK")
</pallas_src>

<mosaic_0001>
module attributes {stable_mosaic.version = 11 : i64} {
  func.func @_focal_kernel(%arg0: i32, %arg1: i32, %arg2: memref<16x128xf32, #tpu.memory_space<vmem>>, %arg3: memref<16x128xf32, #tpu.memory_space<vmem>>, %arg4: memref<1x8x128xf32, #tpu.memory_space<vmem>>) attributes {dimension_semantics = [#tpu.dimension_semantics<parallel>, #tpu.dimension_semantics<arbitrary>], iteration_bounds = array<i64: 1, 1>, scalar_prefetch = 0 : i64, scratch_operands = 0 : i64, tpu.core_type = #tpu.core_type<tc>, window_params = [{transform_indices = @transform_0, window_bounds = array<i64: 16, 128>}, {transform_indices = @transform_1, window_bounds = array<i64: 16, 128>}, {transform_indices = @transform_2, window_bounds = array<i64: 1, 8, 128>}]} {
    %c0_i32 = arith.constant 0 : i32
    %0 = arith.cmpi eq, %arg1, %c0_i32 : i32
    %1 = arith.extui %0 : i1 to i32
    %c0_i32_0 = arith.constant 0 : i32
    %2 = arith.cmpi ne, %1, %c0_i32_0 : i32
    scf.if %2 {
      %cst_15 = arith.constant 0.000000e+00 : f32
      %30 = vector.broadcast %cst_15 : f32 to vector<1x8x128xf32>
      %c0_16 = arith.constant 0 : index
      %c0_17 = arith.constant 0 : index
      %c0_18 = arith.constant 0 : index
      %31 = vector.load %arg4[%c0_16, %c0_17, %c0_18] : memref<1x8x128xf32, #tpu.memory_space<vmem>>, vector<1x8x128xf32>
      tpu.vector_store %arg4[%c0_16, %c0_17, %c0_18], %30 {strides = array<i32>} : memref<1x8x128xf32, #tpu.memory_space<vmem>>, vector<1x8x128xf32>,
    } else {
    }
    %c0 = arith.constant 0 : index
    %c0_1 = arith.constant 0 : index
    %3 = vector.load %arg2[%c0, %c0_1] : memref<16x128xf32, #tpu.memory_space<vmem>>, vector<16x128xf32>
    %c0_2 = arith.constant 0 : index
    %c0_3 = arith.constant 0 : index
    %4 = vector.load %arg3[%c0_2, %c0_3] : memref<16x128xf32, #tpu.memory_space<vmem>>, vector<16x128xf32>
    %5 = math.absf %3 : vector<16x128xf32>
    %cst = arith.constant 0.000000e+00 : f32
    %6 = vector.broadcast %cst : f32 to vector<16x128xf32>
    %7 = arith.subf %6, %5 : vector<16x128xf32>
    %8 = math.exp %7 : vector<16x128xf32>
    %cst_4 = arith.constant 0.000000e+00 : f32
    %9 = vector.broadcast %cst_4 : f32 to vector<16x128xf32>
    %10 = arith.maximumf %3, %9 : vector<16x128xf32>
    %11 = arith.mulf %3, %4 : vector<16x128xf32>
    %12 = arith.subf %10, %11 : vector<16x128xf32>
    %13 = math.log1p %8 : vector<16x128xf32>
    %14 = arith.addf %12, %13 : vector<16x128xf32>
    %cst_5 = arith.constant 0.000000e+00 : f32
    %15 = vector.broadcast %cst_5 : f32 to vector<16x128xf32>
    %16 = arith.subf %15, %14 : vector<16x128xf32>
    %17 = math.exp %16 : vector<16x128xf32>
    %cst_6 = arith.constant 1.000000e+00 : f32
    %18 = vector.broadcast %cst_6 : f32 to vector<16x128xf32>
    %19 = arith.subf %18, %17 : vector<16x128xf32>
    %cst_7 = arith.constant 0.000000e+00 : f32
    %20 = vector.broadcast %cst_7 : f32 to vector<16x128xf32>
    %21 = arith.maximumf %19, %20 : vector<16x128xf32>
    %22 = arith.mulf %21, %21 : vector<16x128xf32>
    %23 = arith.mulf %22, %14 : vector<16x128xf32>
    %c0_8 = arith.constant 0 : index
    %c0_9 = arith.constant 0 : index
    %c0_10 = arith.constant 0 : index
    %24 = vector.load %arg4[%c0_8, %c0_9, %c0_10] : memref<1x8x128xf32, #tpu.memory_space<vmem>>, vector<1x8x128xf32>
    %25 = vector.shape_cast %23 : vector<16x128xf32> to vector<2x8x128xf32>
    %cst_11 = arith.constant dense<0.000000e+00> : vector<8x128xf32>
    %26 = vector.multi_reduction <add>, %25, %cst_11 [0] : vector<2x8x128xf32> to vector<8x128xf32>
    %27 = vector.shape_cast %26 : vector<8x128xf32> to vector<1x8x128xf32>
    %28 = arith.addf %24, %27 : vector<1x8x128xf32>
    %c0_12 = arith.constant 0 : index
    %c0_13 = arith.constant 0 : index
    %c0_14 = arith.constant 0 : index
    %29 = vector.load %arg4[%c0_12, %c0_13, %c0_14] : memref<1x8x128xf32, #tpu.memory_space<vmem>>, vector<1x8x128xf32>
    tpu.vector_store %arg4[%c0_12, %c0_13, %c0_14], %28 {strides = array<i32>} : memref<1x8x128xf32, #tpu.memory_space<vmem>>, vector<1x8x128xf32>,
    return
  }
  func.func @transform_0(%arg0: i32, %arg1: i32) -> (i32, i32) {
    %c1_i32 = arith.constant 1 : i32
    %0 = arith.muli %arg0, %c1_i32 : i32
    %1 = arith.addi %0, %arg1 : i32
    %c0_i32 = arith.constant 0 : i32
    %2 = arith.minsi %1, %c0_i32 : i32
    %c0_i32_0 = arith.constant 0 : i32
    %c0_i32_1 = arith.constant 0 : i32
    return %2, %c0_i32_0 : i32, i32
  }
  func.func @transform_1(%arg0: i32, %arg1: i32) -> (i32, i32) {
    %c1_i32 = arith.constant 1 : i32
    %0 = arith.muli %arg0, %c1_i32 : i32
    %1 = arith.addi %0, %arg1 : i32
    %c0_i32 = arith.constant 0 : i32
    %2 = arith.minsi %1, %c0_i32 : i32
    %c0_i32_0 = arith.constant 0 : i32
    %c0_i32_1 = arith.constant 0 : i32
    return %2, %c0_i32_0 : i32, i32
  }
  func.func @transform_2(%arg0: i32, %arg1: i32) -> (i32, i32, i32) {
    %c0_i32 = arith.constant 0 : i32
    %c0_i32_0 = arith.constant 0 : i32
    %c0_i32_1 = arith.constant 0 : i32
    return %arg0, %c0_i32, %c0_i32_0 : i32, i32, i32
  }
}

</mosaic_0001>

<llo_original>
// kernel: tpu_custom_call.1
$region0: #{tpu_custom_call.1}
  #allocation0 [shape = 'u32[]', space=smem, size = 0x4, offset = 0x4, fixed_abs, tag = 'smem constant byte address 0x4 - core index']
  #allocation1 [shape = 'u32[144,128]{1,0:T(1,128)}', space=vmem, size = 0x12000, scoped, tag = 'internal scratch']
  %s0 = inlined_call_operand.hbm [shape: f32[16,128], index: 0, kind: input, shape index: {}]
  %s1 = inlined_call_operand.hbm [shape: f32[16,128], index: 1, kind: input, shape index: {}]
  %s2 = inlined_call_operand.hbm [shape: f32[1,8,128], index: 2, kind: output, shape index: {}]
  %s3 = sld [smem:[#allocation0]]
  $region30: #{tpu_custom_call.1} parent=0
    _
  %s5 = ssub.s32 1, %s3
  %s6 = scalar_select 0, %s5, %s3
  $region1: #{tpu_custom_call.1} parent=0
    #allocation2 [shape = 'u8[8192]{0}', space=vmem, size = 0x2000, scoped, tag = 'input window, operand 0, single buffered']
    #allocation3 [shape = 's32[1]{0}', space=sflag, size = 0x4, scoped, tag = 'scoped memory for tpu_custom_call.1']
    #allocation4 [shape = 's32[1]{0}', space=sflag, size = 0x4, scoped, tag = 'scoped memory for tpu_custom_call.1']
    #allocation5 [shape = 'u8[8192]{0}', space=vmem, size = 0x2000, scoped, tag = 'input window, operand 1, single buffered']
    #allocation6 [shape = 's32[1]{0}', space=sflag, size = 0x4, scoped, tag = 'scoped memory for tpu_custom_call.1']
    #allocation7 [shape = 'u8[4096]{0}', space=vmem, size = 0x1000, scoped, tag = 'output window, operand 0, single buffered']
    %7 = vsyncpa [#allocation3], 0
    %8 = vsyncpa [#allocation6], 0
    %9 = vsyncpa [#allocation4], 0
    // Predicated region
    $region2: #{tpu_custom_call.1} parent=1 // pred_check
      _
    $region3: #{tpu_custom_call.1} parent=1 // pred_check_branch
      %11 = sbr.rel (0) target = $region5
    $region4: #{tpu_custom_call.1} parent=1 // pred_region
      %s12 = sadd.s32 0, 0
      %p13 = scmp.lt.s32.totalorder %s12, 0
      %s14 = scalar_select %p13, %s12, 0
      %s15 = smul.u32 2, %s14
      %s17 = ssub.s32 256, 256
      %18 = vsyncadd [#allocation3], %s17
      %s19 = smul.addr %s15, 128
      %s20 = scalar_lea.hbm %s0, %s19
      %s21 = sshll.u32 [#allocation2], 4
      %s22 = int_to_ptr.vmem [resolvable:$true] %s21
      %27 = dma.hbm_to_vmem [thread:$0]  %s20, 256, %s22, [#allocation3], 128, 128, 8
    $region5: #{tpu_custom_call.1} parent=1 // pred_fallthru
      _
    // Predicated region
    $region6: #{tpu_custom_call.1} parent=1 // pred_check
      _
    $region7: #{tpu_custom_call.1} parent=1 // pred_check_branch
      %29 = sbr.rel (0) target = $region9
    $region8: #{tpu_custom_call.1} parent=1 // pred_region
      %s30 = sadd.s32 0, 0
      %p31 = scmp.lt.s32.totalorder %s30, 0
      %s32 = scalar_select %p31, %s30, 0
      %s33 = smul.u32 2, %s32
      %s35 = ssub.s32 256, 256
      %36 = vsyncadd [#allocation6], %s35
      %s37 = smul.addr %s33, 128
      %s38 = scalar_lea.hbm %s1, %s37
      %s39 = sshll.u32 [#allocation5], 4
      %s40 = int_to_ptr.vmem [resolvable:$true] %s39
      %45 = dma.hbm_to_vmem [thread:$0]  %s38, 256, %s40, [#allocation6], 128, 128, 8
    $region9: #{tpu_custom_call.1} parent=1 // pred_fallthru
      _
    // Predicated region
    $region10: #{tpu_custom_call.1} parent=1 // pred_check
      _
    $region11: #{tpu_custom_call.1} parent=1 // pred_check_branch
      %47 = sbr.rel (0) target = $region13
    $region12: #{tpu_custom_call.1} parent=1 // pred_region
      %48 = dma.done [#allocation3], 256
    $region13: #{tpu_custom_call.1} parent=1 // pred_fallthru
      _
    // Predicated region
    $region14: #{tpu_custom_call.1} parent=1 // pred_check
      _
    $region15: #{tpu_custom_call.1} parent=1 // pred_check_branch
      %50 = sbr.rel (0) target = $region17
    $region16: #{tpu_custom_call.1} parent=1 // pred_region
      %51 = dma.done [#allocation6], 256
    $region17: #{tpu_custom_call.1} parent=1 // pred_fallthru
      _
    %s52 = sadd.s32 0, 0
    %p53 = scmp.lt.s32.totalorder %s52, 0
    %s54 = scalar_select %p53, %s52, 0
    %s55 = smul.u32 2, %s54
    %s56 = sadd.s32 0, 0
    %p57 = scmp.lt.s32.totalorder %s56, 0
    %s58 = scalar_select %p57, %s56, 0
    %s59 = smul.u32 2, %s58
    %p60 = scmp.eq.s32.totalorder 0, 0
    // Predicated region
    $region18: #{tpu_custom_call.1} parent=1 // pred_check
      %p61 = pneg %p60
    $region19: #{tpu_custom_call.1} parent=1 // pred_check_branch
      %63 = sbr.rel (%p61) target = $region21
    $region20: #{tpu_custom_call.1} parent=1 // pred_region
      %64 = vst [vmem:[#allocation7] sm:$0xff] 0.0
    $region21: #{tpu_custom_call.1} parent=1 // pred_fallthru
      _
    %v65 = vld [vmem:[#allocation2] sm:$0xff]
    %v66 = vld [vmem:[#allocation2 + $0x8] sm:$0xff]
    %v67 = vld [vmem:[#allocation5] sm:$0xff]
    %v68 = vld [vmem:[#allocation5 + $0x8] sm:$0xff]
    %v69 = vand.u32 2147483647, %v65
    %v70 = vand.u32 2147483647, %v66
    %v71 = vsub.f32 0.0, %v69
    %v72 = vsub.f32 0.0, %v70
    %v73 = vmul.f32 %v71, 1.442695
    %v74 = vpow.pop %v73
    %v75 = vmul.f32 %v72, 1.442695
    %v76 = vpow.pop %v75
    %v77 = vmax.f32 %v65, 0.0
    %v78 = vmax.f32 %v66, 0.0
    %v79 = vmul.f32 %v65, %v67
    %v80 = vmul.f32 %v66, %v68
    %v81 = vsub.f32 %v77, %v79
    %v82 = vsub.f32 %v78, %v80
    %v83 = vadd.f32 %v74, 1.0
    %v84 = vlog2.pop %v83
    %v85 = vmul.f32 %v84, 0.6931472
    %v86 = vmul.f32 -0.5, %v74
    %v87 = vadd.f32 %v86, 1.0
    %v88 = vmul.f32 %v87, %v74
    %v89 = vand.u32 2147483647, %v74
    %vm90 = vcmp.lt.f32.partialorder %v89, 0.0004427343
    %v91 = vsel %vm90, %v88, %v85
    %v92 = vadd.f32 %v76, 1.0
    %v93 = vlog2.pop %v92
    %v94 = vmul.f32 %v93, 0.6931472
    %v95 = vmul.f32 -0.5, %v76
    %v96 = vadd.f32 %v95, 1.0
    %v97 = vmul.f32 %v96, %v76
    %v98 = vand.u32 2147483647, %v76
    %vm99 = vcmp.lt.f32.partialorder %v98, 0.0004427343
    %v100 = vsel %vm99, %v97, %v94
    %v101 = vadd.f32 %v81, %v91
    %v102 = vadd.f32 %v82, %v100
    %v103 = vsub.f32 0.0, %v101
    %v104 = vsub.f32 0.0, %v102
    %v105 = vmul.f32 %v103, 1.442695
    %v106 = vpow.pop %v105
    %v107 = vmul.f32 %v104, 1.442695
    %v108 = vpow.pop %v107
    %v109 = vsub.f32 1.0, %v106
    %v110 = vsub.f32 1.0, %v108
    %v111 = vmax.f32 %v109, 0.0
    %v112 = vmax.f32 %v110, 0.0
    %v113 = vmul.f32 %v111, %v111
    %v114 = vmul.f32 %v112, %v112
    %v115 = vmul.f32 %v113, %v101
    %v116 = vmul.f32 %v114, %v102
    %v117 = vld [vmem:[#allocation7] sm:$0xff]
    %v118 = vadd.f32 %v115, %v116
    %v119 = vadd.f32 %v117, %v118
    %120 = vst [vmem:[#allocation7] sm:$0xff] %v119
    // Predicated region
    $region22: #{tpu_custom_call.1} parent=1 // pred_check
      _
    $region23: #{tpu_custom_call.1} parent=1 // pred_check_branch
      %122 = sbr.rel (0) target = $region25
    $region24: #{tpu_custom_call.1} parent=1 // pred_region
      %s124 = ssub.s32 128, 128
      %125 = vsyncadd [#allocation4], %s124
      %s127 = sshll.u32 [#allocation7], 4
      %s128 = int_to_ptr.vmem [resolvable:$true] %s127
      %130 = dma.vmem_to_hbm [thread:$0]  %s128, 128, %s2, [#allocation4]
    $region25: #{tpu_custom_call.1} parent=1 // pred_fallthru
      _
    // Predicated region
    $region26: #{tpu_custom_call.1} parent=1 // pred_check
      _
    $region27: #{tpu_custom_call.1} parent=1 // pred_check_branch
      %132 = sbr.rel (0) target = $region29
    $region28: #{tpu_custom_call.1} parent=1 // pred_region
      %133 = dma.done [#allocation4], 128
    $region29: #{tpu_custom_call.1} parent=1 // pred_fallthru
      _
    %134 = vsyncpa [#allocation3], 1
    %135 = vsyncpa [#allocation6], 1
    %136 = vsyncpa [#allocation4], 1

</llo_original>
